<compile_context>
chip_gen: v7x
topology: tpu7x:2x2x1
jax: 0.10.0
libtpu: 0.0.40
codegen_flags: <defaults>
</compile_context>

<pallas_src>
import jax
import jax.numpy as jnp
from jax import lax
from jax.experimental import pallas as pl
from jax.experimental.pallas import tpu as pltpu


def _round_up(x, m):
    return ((x + m - 1) // m) * m


def _cdiv(a, b):
    return (a + b - 1) // b


def _phys_vmem_bytes():
    """Physical VMEM of the current chip; conservative 64 MiB (v7x) fallback."""
    try:
        info = pltpu.get_tpu_info()
        v = getattr(info, "vmem_capacity_bytes", None)
        if v:
            return int(v)
    except Exception:
        pass
    return 64 * 2 ** 20


def _vmem_estimate(tc, Dp, Qp):
    """Rough per-grid-step VMEM bytes (double-buffered tiles + intermediates)."""
    f32, bf16 = 4, 2
    ctx_in = 2 * tc * Dp * f32           # context tile (double-buffered)
    out_buf = 2 * tc * 3 * Dp * f32      # [ctx | a | ctx*a] output tile
    m_buf = 2 * tc * 128 * f32           # row-max tile (lane padded)
    qry = 2 * Qp * Dp * bf16             # resident bf16 query
    sq = 2 * 8 * Qp * f32                # hoisted query-side logits
    w = 8 * Dp * f32                     # [w_ctx ; w_prod]
    interm = 4 * tc * Qp * f32 + 3 * tc * Dp * f32  # sim/p/alpha + epilogue temps
    return ctx_in + out_buf + m_buf + qry + sq + w + interm


def _choose_ctx_tile(B, C, Dp, Qp, budget):
    cmax = _round_up(max(C, 8), 8)
    tc = 8
    for cand in (512, 256, 128, 64, 32, 16, 8):
        if cand > cmax:
            continue
        if _vmem_estimate(cand, Dp, Qp) <= budget:
            tc = cand
            break
    # Keep >= 2 parallel grid points so both v7x TensorCores are fed.
    while tc > 8 and B * _cdiv(C, tc) < 2:
        tc //= 2
    return tc


def _make_attention_kernel(Q, Qp, Dp):
    """Fused pass 1: one sim matmul -> row-max m, alpha softmax, a, 3 chunks."""

    def kernel(ctx_ref, qry_ref, sq_ref, w_ref, out_ref, m_ref):
        ctx = ctx_ref[0]                          # (TC, Dp) f32
        qry = qry_ref[0]                          # (Qp, Dp) bf16 (pre-cast)
        w_c = w_ref[0:1, :]                       # (1, Dp)
        w_p = w_ref[1:2, :]                       # (1, Dp)

        # sim[i, j] = ctx[i]·w_c + (ctx[i]*w_p)·qry[j] + (qry[j]·w_q + bias)
        s_c = jnp.sum(ctx * w_c, axis=-1, keepdims=True)              # (TC, 1)
        lhs = (ctx * w_p).astype(jnp.bfloat16)
        s_p = lax.dot_general(lhs, qry, (((1,), (1,)), ((), ())),
                              preferred_element_type=jnp.float32)      # (TC, Qp)
        sim = s_p + s_c + sq_ref[0]                                    # (TC, Qp)

        if Qp > Q:  # static trace-time branch: mask padded query columns
            col = lax.broadcasted_iota(jnp.int32, sim.shape, 1)
            sim = jnp.where(col < Q, sim, jnp.float32(-1e30))

        # c2q softmax over the query axis (reciprocal rides the EUP slot).
        m = jnp.max(sim, axis=-1, keepdims=True)                       # (TC, 1)
        p = jnp.exp(sim - m)
        inv = pl.reciprocal(jnp.sum(p, axis=-1, keepdims=True), approx=True)
        alpha = p * inv                                                # (TC, Qp)

        a = lax.dot_general(alpha.astype(jnp.bfloat16), qry,
                            (((1,), (0,)), ((), ())),
                            preferred_element_type=jnp.float32)        # (TC, Dp)

        # Lane-aligned, full-width slice stores (Dp is a multiple of 128).
        out_ref[0, :, 0:Dp] = ctx
        out_ref[0, :, Dp:2 * Dp] = a
        out_ref[0, :, 2 * Dp:3 * Dp] = ctx * a
        m_ref[0] = m

    return kernel


def _d_chunk_kernel(ctx_ref, b_ref, out_hbm_ref, out_ref):
    # Pass 2: fill only lanes [3*Dp:4*Dp) with ctx*b; the rest of the aliased
    # output buffer is never touched (preserved from pass 1).
    del out_hbm_ref
    out_ref[0] = ctx_ref[0] * b_ref[0]


@jax.jit
def attention_no_mask(context, context_masks, query, query_masks, weight, bias):
    """Pallas implementation of AttentionNoMask.forward (eval-mode dropout).

    context: (B, C, D) f32, query: (B, Q, D) f32, context_masks: (B, C),
    query_masks: (B, Q) (unused, matching the reference forward),
    weight: (1, 3*D) f32 (nn.Linear weight), bias: (1,) f32.
    Returns (B, C, 4*D) f32.
    """
    del query_masks  # unused in the PyTorch forward pass
    context = context.astype(jnp.float32)
    query = query.astype(jnp.float32)
    B, C, D = context.shape
    Q = query.shape[1]

    Dp = _round_up(D, 128)
    Qp = _round_up(Q, 128)

    phys = _phys_vmem_bytes()
    TC = _choose_ctx_tile(B, C, Dp, Qp, budget=int(0.55 * phys))
    Cp = _round_up(C, TC)
    est = _vmem_estimate(TC, Dp, Qp)
    vmem_limit = int(min(0.85 * phys, max(32 * 2 ** 20, 2 * est)))
    cparams = pltpu.CompilerParams(
        dimension_semantics=("parallel", "parallel"),
        vmem_limit_bytes=vmem_limit)

    w3 = weight.reshape(3, D).astype(jnp.float32)  # rows: [w_ctx, w_qry, w_prod]

    # Zero padding of features / rows / query positions is numerically inert
    # (padded sim columns are additionally masked inside the kernel).
    ctx_p = jnp.zeros((B, Cp, Dp), jnp.float32).at[:, :C, :D].set(context)
    qry_p = (jnp.zeros((B, Qp, Dp), jnp.float32)
             .at[:, :Q, :D].set(query).astype(jnp.bfloat16))        # bf16 pre-cast
    wcp = (jnp.zeros((2, Dp), jnp.float32)
           .at[0, :D].set(w3[0]).at[1, :D].set(w3[2]))
    # Hoisted query-side logits (+ bias): s_q[j] = qry[j]·w_q + bias, per batch.
    sq = jnp.einsum("bqd,d->bq", query, w3[1]) + bias[0].astype(jnp.float32)
    sq_p = jnp.zeros((B, 1, Qp), jnp.float32).at[:, 0, :Q].set(sq)

    grid = (B, Cp // TC)

    # --- Pass 1 (fused): sim once per tile -> m + [ctx | a | ctx*a].
    outp, m = pl.pallas_call(
        _make_attention_kernel(Q, Qp, Dp),
        out_shape=(jax.ShapeDtypeStruct((B, Cp, 4 * Dp), jnp.float32),
                   jax.ShapeDtypeStruct((B, Cp, 1), jnp.float32)),
        grid_spec=pltpu.PrefetchScalarGridSpec(
            num_scalar_prefetch=0,
            grid=grid,
            in_specs=[
                pl.BlockSpec((1, TC, Dp), lambda b, c: (b, c, 0)),   # context tile
                pl.BlockSpec((1, Qp, Dp), lambda b, c: (b, 0, 0)),   # bf16 query
                pl.BlockSpec((1, 1, Qp), lambda b, c: (b, 0, 0)),    # hoisted s_q+bias
                pl.BlockSpec((2, Dp), lambda b, c: (0, 0)),          # [w_ctx; w_prod]
            ],
            out_specs=(
                # Only the 3 b-independent chunks; chunk 3 is filled by pass 2.
                pl.BlockSpec((1, TC, 3 * Dp), lambda b, c: (b, c, 0)),
                pl.BlockSpec((1, TC, 1), lambda b, c: (b, c, 0)),
            ),
        ),
        compiler_params=cparams,
    )(ctx_p, qry_p, sq_p, wcp)

    # --- Cheap global-C reduction in plain JAX (O(B*C*D)): beta softmax + b.
    q2c = m[:, :C, 0]                                                # (B, C)
    beta = jax.nn.softmax(q2c, axis=-1) * context_masks.astype(jnp.float32)
    b_vec = jnp.einsum("bc,bcd->bd", beta, context)                  # (B, D)
    b_pad = jnp.zeros((B, 1, Dp), jnp.float32).at[:, 0, :D].set(b_vec)

    # --- Pass 2: write only the b-dependent chunk in place (aliased output).
    outp = pl.pallas_call(
        _d_chunk_kernel,
        out_shape=jax.ShapeDtypeStruct((B, Cp, 4 * Dp), jnp.float32),
        grid_spec=pltpu.PrefetchScalarGridSpec(
            num_scalar_prefetch=0,
            grid=grid,
            in_specs=[
                pl.BlockSpec((1, TC, Dp), lambda b, c: (b, c, 0)),   # context tile
                pl.BlockSpec((1, 1, Dp), lambda b, c: (b, 0, 0)),    # b vector
                pl.BlockSpec(memory_space=pl.ANY),                   # aliased output
            ],
            out_specs=pl.BlockSpec((1, TC, Dp), lambda b, c: (b, c, 3)),
        ),
        input_output_aliases={2: 0},
        compiler_params=cparams,
    )(ctx_p, b_pad, outp)

    # Un-pad: (B, Cp, 4*Dp) -> (B, C, 4*D) (free reshapes when no padding).
    return outp.reshape(B, Cp, 4, Dp)[:, :C, :, :D].reshape(B, C, 4 * D)


def reference_forward(context, context_masks, query, query_masks, weight, bias):
    """Pure-JAX mirror of the PyTorch forward (eval-mode dropout), all f32."""
    del query_masks
    B, C, D = context.shape
    Q = query.shape[1]
    ctx_ = jnp.broadcast_to(context[:, :, None, :], (B, C, Q, D))
    qry_ = jnp.broadcast_to(query[:, None, :, :], (B, C, Q, D))
    cq = jnp.concatenate([ctx_, qry_, ctx_ * qry_], axis=-1)         # (B,C,Q,3D)
    sim = jnp.einsum("bcqk,k->bcq", cq, weight.reshape(-1)) + bias[0]
    alpha = jax.nn.softmax(sim, axis=-1)
    a = jnp.einsum("bcq,bqd->bcd", alpha, query)
    q2c = jnp.max(sim, axis=-1)                                      # (B, C)
    beta = jax.nn.softmax(q2c, axis=-1) * context_masks              # (B, C)
    b = jnp.einsum("bc,bcd->bd", beta, context)[:, None, :]
    b = jnp.broadcast_to(b, (B, C, D))
    c = context * a
    d = context * b
    return jnp.concatenate([context, a, c, d], axis=-1)


if __name__ == "__main__":
    # Small shapes consistent with the module: hidden_size=16 -> D = 2*16 = 32.
    B, C_len, Q_len, hidden = 2, 16, 8, 16
    D = 2 * hidden

    key = jax.random.PRNGKey(0)
    k1, k2, k3, k4 = jax.random.split(key, 4)

    context = jax.random.normal(k1, (B, C_len, D), dtype=jnp.float32)
    query = jax.random.normal(k2, (B, Q_len, D), dtype=jnp.float32)
    # Length-style masks (1s then 0s), exercising the masked-beta path.
    context_masks = (jnp.arange(C_len)[None, :] <
                     jnp.array([[C_len], [C_len - 4]])).astype(jnp.float32)
    query_masks = jnp.ones((B, Q_len), dtype=jnp.float32)

    # nn.Linear(hidden*6, 1) parameters, deterministic synthetic init.
    weight = 0.1 * jax.random.normal(k3, (1, 3 * D), dtype=jnp.float32)
    bias = 0.1 * jax.random.normal(k4, (1,), dtype=jnp.float32)

    out = attention_no_mask(context, context_masks, query, query_masks,
                            weight, bias)
    out = jax.block_until_ready(out)

    ref = reference_forward(context, context_masks, query, query_masks,
                            weight, bias)

    assert out.shape == (B, C_len, 4 * D), out.shape
    max_err = float(jnp.max(jnp.abs(out - ref)))
    # bf16 MXU operands (f32 accumulation) + approx reciprocal => relaxed tol.
    assert jnp.allclose(out, ref, rtol=5e-2, atol=5e-2), max_err
    print("KERNEL_OK")
</pallas_src>

<mosaic_0001>
module attributes {stable_mosaic.version = 11 : i64} {
  func.func @kernel(%arg0: i32, %arg1: i32, %arg2: memref<1x16x128xf32, #tpu.memory_space<vmem>>, %arg3: memref<1x128x128xbf16, #tpu.memory_space<vmem>>, %arg4: memref<1x1x128xf32, #tpu.memory_space<vmem>>, %arg5: memref<2x128xf32, #tpu.memory_space<vmem>>, %arg6: memref<1x16x384xf32, #tpu.memory_space<vmem>>, %arg7: memref<1x16x1xf32, #tpu.memory_space<vmem>>) attributes {dimension_semantics = [#tpu.dimension_semantics<parallel>, #tpu.dimension_semantics<parallel>], iteration_bounds = array<i64: 2, 1>, scalar_prefetch = 0 : i64, scratch_operands = 0 : i64, tpu.core_type = #tpu.core_type<tc>, window_params = [{transform_indices = @transform_0, window_bounds = array<i64: 1, 16, 128>}, {transform_indices = @transform_1, window_bounds = array<i64: 1, 128, 128>}, {transform_indices = @transform_2, window_bounds = array<i64: 1, 1, 128>}, {pipeline_mode = #tpu.pipeline_mode<synchronous>, transform_indices = @transform_3, window_bounds = array<i64: 2, 128>}, {transform_indices = @transform_4, window_bounds = array<i64: 1, 16, 384>}, {transform_indices = @transform_5, window_bounds = array<i64: 1, 16, 1>}]} {
    %c0 = arith.constant 0 : index
    %c0_0 = arith.constant 0 : index
    %c0_1 = arith.constant 0 : index
    %0 = vector.load %arg2[%c0, %c0_0, %c0_1] : memref<1x16x128xf32, #tpu.memory_space<vmem>>, vector<1x16x128xf32>
    %1 = vector.shape_cast %0 : vector<1x16x128xf32> to vector<16x128xf32>
    %c0_2 = arith.constant 0 : index
    %c0_3 = arith.constant 0 : index
    %c0_4 = arith.constant 0 : index
    %2 = vector.load %arg3[%c0_2, %c0_3, %c0_4] : memref<1x128x128xbf16, #tpu.memory_space<vmem>>, vector<1x128x128xbf16>
    %3 = vector.shape_cast %2 : vector<1x128x128xbf16> to vector<128x128xbf16>
    %c0_5 = arith.constant 0 : index
    %c0_6 = arith.constant 0 : index
    %4 = vector.load %arg5[%c0_5, %c0_6] : memref<2x128xf32, #tpu.memory_space<vmem>>, vector<1x128xf32>
    %c1 = arith.constant 1 : index
    %c0_7 = arith.constant 0 : index
    %5 = vector.load %arg5[%c1, %c0_7] : memref<2x128xf32, #tpu.memory_space<vmem>>, vector<1x128xf32>
    %6 = vector.broadcast %4 : vector<1x128xf32> to vector<16x128xf32>
    %7 = arith.mulf %1, %6 : vector<16x128xf32>
    %cst = arith.constant dense<0.000000e+00> : vector<16xf32>
    %8 = vector.multi_reduction <add>, %7, %cst [1] : vector<16x128xf32> to vector<16xf32>
    %9 = vector.shape_cast %8 : vector<16xf32> to vector<16x1xf32>
    %10 = vector.broadcast %5 : vector<1x128xf32> to vector<16x128xf32>
    %11 = arith.mulf %1, %10 : vector<16x128xf32>
    %12 = arith.truncf %11 : vector<16x128xf32> to vector<16x128xbf16>
    %cst_8 = arith.constant dense<0.000000e+00> : vector<16x128xf32>
    %13 = tpu.matmul %12, %3, %cst_8 {dimension_numbers = #tpu.dot_dimension_numbers<[1], [1], [0], [0], [0, 0, 1, 0], [], []>} : vector<16x128xbf16>, vector<128x128xbf16>, vector<16x128xf32> -> vector<16x128xf32>
    %14 = vector.broadcast %9 : vector<16x1xf32> to vector<16x128xf32>
    %15 = arith.addf %13, %14 : vector<16x128xf32>
    %c0_9 = arith.constant 0 : index
    %c0_10 = arith.constant 0 : index
    %c0_11 = arith.constant 0 : index
    %16 = vector.load %arg4[%c0_9, %c0_10, %c0_11] : memref<1x1x128xf32, #tpu.memory_space<vmem>>, vector<1x1x128xf32>
    %17 = vector.shape_cast %16 : vector<1x1x128xf32> to vector<1x128xf32>
    %18 = vector.broadcast %17 : vector<1x128xf32> to vector<16x128xf32>
    %19 = arith.addf %15, %18 : vector<16x128xf32>
    %20 = tpu.iota {dimensions = array<i32: 1>} : vector<16x128xi32>
    %c8_i32 = arith.constant 8 : i32
    %21 = vector.broadcast %c8_i32 : i32 to vector<16x128xi32>
    %22 = arith.cmpi slt, %20, %21 : vector<16x128xi32>
    %cst_12 = arith.constant -1.000000e+30 : f32
    %23 = vector.broadcast %cst_12 : f32 to vector<16x128xf32>
    %24 = arith.select %22, %19, %23 : vector<16x128xi1>, vector<16x128xf32>
    %cst_13 = arith.constant dense<0xFF800000> : vector<16xf32>
    %25 = vector.multi_reduction <maximumf>, %24, %cst_13 [1] : vector<16x128xf32> to vector<16xf32>
    %26 = vector.shape_cast %25 : vector<16xf32> to vector<16x1xf32>
    %27 = vector.broadcast %26 : vector<16x1xf32> to vector<16x128xf32>
    %28 = arith.subf %24, %27 : vector<16x128xf32>
    %29 = math.exp %28 : vector<16x128xf32>
    %cst_14 = arith.constant dense<0.000000e+00> : vector<16xf32>
    %30 = vector.multi_reduction <add>, %29, %cst_14 [1] : vector<16x128xf32> to vector<16xf32>
    %31 = vector.shape_cast %30 : vector<16xf32> to vector<16x1xf32>
    %32 = tpu.reciprocal %31 {approx = true} : vector<16x1xf32> -> vector<16x1xf32>
    %33 = vector.broadcast %32 : vector<16x1xf32> to vector<16x128xf32>
    %34 = arith.mulf %29, %33 : vector<16x128xf32>
    %35 = arith.truncf %34 : vector<16x128xf32> to vector<16x128xbf16>
    %cst_15 = arith.constant dense<0.000000e+00> : vector<16x128xf32>
    %36 = tpu.matmul %35, %3, %cst_15 {dimension_numbers = #tpu.dot_dimension_numbers<[1], [0], [0], [1], [0, 0, 1, 1], [], []>} : vector<16x128xbf16>, vector<128x128xbf16>, vector<16x128xf32> -> vector<16x128xf32>
    %c0_16 = arith.constant 0 : index
    %c0_17 = arith.constant 0 : index
    %c0_18 = arith.constant 0 : index
    %37 = vector.load %arg6[%c0_16, %c0_17, %c0_18] : memref<1x16x384xf32, #tpu.memory_space<vmem>>, vector<1x16x128xf32>
    %38 = vector.shape_cast %37 : vector<1x16x128xf32> to vector<16x128xf32>
    %39 = vector.shape_cast %1 : vector<16x128xf32> to vector<1x16x128xf32>
    tpu.vector_store %arg6[%c0_16, %c0_17, %c0_18], %39 {strides = array<i32>} : memref<1x16x384xf32, #tpu.memory_space<vmem>>, vector<1x16x128xf32>,
    %c0_19 = arith.constant 0 : index
    %c0_20 = arith.constant 0 : index
    %c128 = arith.constant 128 : index
    %40 = vector.load %arg6[%c0_19, %c0_20, %c128] : memref<1x16x384xf32, #tpu.memory_space<vmem>>, vector<1x16x128xf32>
    %41 = vector.shape_cast %40 : vector<1x16x128xf32> to vector<16x128xf32>
    %42 = vector.shape_cast %36 : vector<16x128xf32> to vector<1x16x128xf32>
    tpu.vector_store %arg6[%c0_19, %c0_20, %c128], %42 {strides = array<i32>} : memref<1x16x384xf32, #tpu.memory_space<vmem>>, vector<1x16x128xf32>,
    %43 = arith.mulf %1, %36 : vector<16x128xf32>
    %c0_21 = arith.constant 0 : index
    %c0_22 = arith.constant 0 : index
    %c256 = arith.constant 256 : index
    %44 = vector.load %arg6[%c0_21, %c0_22, %c256] : memref<1x16x384xf32, #tpu.memory_space<vmem>>, vector<1x16x128xf32>
    %45 = vector.shape_cast %44 : vector<1x16x128xf32> to vector<16x128xf32>
    %46 = vector.shape_cast %43 : vector<16x128xf32> to vector<1x16x128xf32>
    tpu.vector_store %arg6[%c0_21, %c0_22, %c256], %46 {strides = array<i32>} : memref<1x16x384xf32, #tpu.memory_space<vmem>>, vector<1x16x128xf32>,
    %c0_23 = arith.constant 0 : index
    %c0_24 = arith.constant 0 : index
    %c0_25 = arith.constant 0 : index
    %47 = vector.load %arg7[%c0_23, %c0_24, %c0_25] : memref<1x16x1xf32, #tpu.memory_space<vmem>>, vector<1x16x1xf32>
    %48 = vector.shape_cast %47 : vector<1x16x1xf32> to vector<16x1xf32>
    %49 = vector.shape_cast %26 : vector<16x1xf32> to vector<1x16x1xf32>
    tpu.vector_store %arg7[%c0_23, %c0_24, %c0_25], %49 {strides = array<i32>} : memref<1x16x1xf32, #tpu.memory_space<vmem>>, vector<1x16x1xf32>,
    return
  }
  func.func @transform_0(%arg0: i32, %arg1: i32) -> (i32, i32, i32) {
    %c0_i32 = arith.constant 0 : i32
    %c0_i32_0 = arith.constant 0 : i32
    return %arg0, %arg1, %c0_i32 : i32, i32, i32
  }
  func.func @transform_1(%arg0: i32, %arg1: i32) -> (i32, i32, i32) {
    %c0_i32 = arith.constant 0 : i32
    %c0_i32_0 = arith.constant 0 : i32
    %c0_i32_1 = arith.constant 0 : i32
    return %arg0, %c0_i32, %c0_i32_0 : i32, i32, i32
  }
  func.func @transform_2(%arg0: i32, %arg1: i32) -> (i32, i32, i32) {
    %c0_i32 = arith.constant 0 : i32
    %c0_i32_0 = arith.constant 0 : i32
    %c0_i32_1 = arith.constant 0 : i32
    return %arg0, %c0_i32, %c0_i32_0 : i32, i32, i32
  }
  func.func @transform_3(%arg0: i32, %arg1: i32) -> (i32, i32) {
    %c0_i32 = arith.constant 0 : i32
    %c0_i32_0 = arith.constant 0 : i32
    %c0_i32_1 = arith.constant 0 : i32
    return %c0_i32, %c0_i32_0 : i32, i32
  }
  func.func @transform_4(%arg0: i32, %arg1: i32) -> (i32, i32, i32) {
    %c0_i32 = arith.constant 0 : i32
    %c0_i32_0 = arith.constant 0 : i32
    return %arg0, %arg1, %c0_i32 : i32, i32, i32
  }
  func.func @transform_5(%arg0: i32, %arg1: i32) -> (i32, i32, i32) {
    %c0_i32 = arith.constant 0 : i32
    %c0_i32_0 = arith.constant 0 : i32
    return %arg0, %arg1, %c0_i32 : i32, i32, i32
  }
}

module attributes {stable_mosaic.version = 11 : i64} {
  func.func @_d_chunk_kernel(%arg0: i32, %arg1: i32, %arg2: memref<1x16x128xf32, #tpu.memory_space<vmem>>, %arg3: memref<1x1x128xf32, #tpu.memory_space<vmem>>, %arg4: memref<2x16x512xf32, #tpu.memory_space<any>>, %arg5: memref<1x16x128xf32, #tpu.memory_space<vmem>>) attributes {dimension_semantics = [#tpu.dimension_semantics<parallel>, #tpu.dimension_semantics<parallel>], iteration_bounds = array<i64: 2, 1>, scalar_prefetch = 0 : i64, scratch_operands = 0 : i64, tpu.core_type = #tpu.core_type<tc>, window_params = [{transform_indices = @transform_0, window_bounds = array<i64: 1, 16, 128>}, {transform_indices = @transform_1, window_bounds = array<i64: 1, 1, 128>}, {}, {transform_indices = @transform_3, window_bounds = array<i64: 1, 16, 128>}]} {
    %c0 = arith.constant 0 : index
    %c0_0 = arith.constant 0 : index
    %c0_1 = arith.constant 0 : index
    %0 = vector.load %arg2[%c0, %c0_0, %c0_1] : memref<1x16x128xf32, #tpu.memory_space<vmem>>, vector<1x16x128xf32>
    %1 = vector.shape_cast %0 : vector<1x16x128xf32> to vector<16x128xf32>
    %c0_2 = arith.constant 0 : index
    %c0_3 = arith.constant 0 : index
    %c0_4 = arith.constant 0 : index
    %2 = vector.load %arg3[%c0_2, %c0_3, %c0_4] : memref<1x1x128xf32, #tpu.memory_space<vmem>>, vector<1x1x128xf32>
    %3 = vector.shape_cast %2 : vector<1x1x128xf32> to vector<1x128xf32>
    %4 = vector.broadcast %3 : vector<1x128xf32> to vector<16x128xf32>
    %5 = arith.mulf %1, %4 : vector<16x128xf32>
    %c0_5 = arith.constant 0 : index
    %c0_6 = arith.constant 0 : index
    %c0_7 = arith.constant 0 : index
    %6 = vector.load %arg5[%c0_5, %c0_6, %c0_7] : memref<1x16x128xf32, #tpu.memory_space<vmem>>, vector<1x16x128xf32>
    %7 = vector.shape_cast %6 : vector<1x16x128xf32> to vector<16x128xf32>
    %8 = vector.shape_cast %5 : vector<16x128xf32> to vector<1x16x128xf32>
    tpu.vector_store %arg5[%c0_5, %c0_6, %c0_7], %8 {strides = array<i32>} : memref<1x16x128xf32, #tpu.memory_space<vmem>>, vector<1x16x128xf32>,
    return
  }
  func.func @transform_0(%arg0: i32, %arg1: i32) -> (i32, i32, i32) {
    %c0_i32 = arith.constant 0 : i32
    %c0_i32_0 = arith.constant 0 : i32
    return %arg0, %arg1, %c0_i32 : i32, i32, i32
  }
  func.func @transform_1(%arg0: i32, %arg1: i32) -> (i32, i32, i32) {
    %c0_i32 = arith.constant 0 : i32
    %c0_i32_0 = arith.constant 0 : i32
    %c0_i32_1 = arith.constant 0 : i32
    return %arg0, %c0_i32, %c0_i32_0 : i32, i32, i32
  }
  func.func @transform_3(%arg0: i32, %arg1: i32) -> (i32, i32, i32) {
    %c3_i32 = arith.constant 3 : i32
    %c0_i32 = arith.constant 0 : i32
    return %arg0, %arg1, %c3_i32 : i32, i32, i32
  }
}

</mosaic_0001>

<llo_original>
// kernel: attention_no_mask.3
$region0: #{attention_no_mask.3}
  #allocation0 [shape = 'u32[]', space=smem, size = 0x4, offset = 0x4, fixed_abs, tag = 'smem constant byte address 0x4 - core index']
  #allocation1 [shape = 'u32[144,128]{1,0:T(1,128)}', space=vmem, size = 0x12000, scoped, tag = 'internal scratch']
  %s0 = inlined_call_operand.vmem [shape: f32[2,16,128], index: 0, kind: input, shape index: {}]
  %s1 = inlined_call_operand.vmem [shape: f32[2,1,128], index: 1, kind: input, shape index: {}]
  %s2 = inlined_call_operand.vmem [shape: f32[2,16,512], index: 2, kind: input, shape index: {}, may-alias: {2,3}]
  %s3 = inlined_call_operand.vmem [shape: f32[2,16,512], index: 3, kind: output, shape index: {}, may-alias: {2,3}]
  %s4 = sld [smem:[#allocation0]]
  $region75: #{attention_no_mask.3} parent=0
    _
  %s6 = ssub.s32 1, %s4
  %s7 = scalar_select 0, %s6, %s4
  $region1: #{attention_no_mask.3} parent=0
    #allocation2 [shape = 'u8[16384]{0}', space=vmem, size = 0x4000, scoped, tag = 'output window, operand 0']
    loop: start=0, step=1, limit=4
    $region2: #{attention_no_mask.3} parent=1 // loop_pre_header
      _
    $region3: #{attention_no_mask.3} parent=1 // loop_header
      %s9 = sphi 0, %s13
      %p10 = scmp.ge.s32.totalorder %s9, 4
      %s16 = sphi 0, %s28
      %s17 = sphi 0, %s24
      %s18 = sphi 0, %s16
      %s19 = sphi 0, %s17
      %s20 = sphi 0, %s18
      %s21 = sphi 0, %s19
      %s33 = sphi 0, %s35
      %s36 = sphi 0, %s33
      %s37 = sphi 0, %s36
      %s53 = sphi 0, %s37
      %s59 = sphi 0, %s61
      %s62 = sphi 0, %s59
      %s63 = sphi 0, %s62
      %s79 = sphi 0, %s63
      %s87 = sphi 0, %s89
      %s90 = sphi 0, %s87
      %s91 = sphi 0, %s90
      %s107 = sphi 0, %s91
    $region4: #{attention_no_mask.3} parent=1 // loop_header_branch
      %12 = sbr.rel (%p10) target = $region8
    $region5: #{attention_no_mask.3} parent=1 // loop_body
      %s14 = ssub.s32 %s9, 1
      %s15 = ssub.s32 %s9, 2
      %s22 = sadd.s32 1, %s17
      %p23 = scmp.ge.s32.totalorder %s22, 1
      %s24 = scalar_select %p23, 0, %s22
      %s25 = sadd.s32 1, %s16
      %s26 = scalar_select %p23, %s25, %s16
      %p27 = scmp.ge.s32.totalorder %s26, 2
      %s28 = scalar_select %p27, 0, %s26
      %s29 = ssub.s32 %s16, %s28
      %s30 = ssub.s32 %s17, %s24
      %s31 = sor.u32 %s29, %s30
      %p32 = scmp.eq.s32.totalorder %s31, 0
      %s34 = sadd.s32 %s33, 1
      %s35 = scalar_select %p32, %s33, %s34
      %p38 = pneg %p32
      %p39 = scmp.eq.s32.totalorder %s9, 1
      %p40 = por %p38, %p39
      %p41 = scmp.ne.s32.totalorder %s33, %s36
      %p42 = scmp.eq.s32.totalorder %s9, 0
      %p43 = por %p41, %p42
      %p44 = scmp.ne.s32.totalorder %s33, %s36
      %p45 = scmp.eq.s32.totalorder %s14, 1
      %p46 = por %p44, %p45
      %p47 = scmp.ne.s32.totalorder %s36, %s37
      %p48 = scmp.eq.s32.totalorder %s14, 0
      %p49 = por %p47, %p48
      %p50 = scmp.ne.s32.totalorder %s36, %s37
      %p51 = scmp.eq.s32.totalorder %s15, 1
      %p52 = por %p50, %p51
      %p54 = scmp.ne.s32.totalorder %s37, %s53
      %p55 = scmp.eq.s32.totalorder %s15, 0
      %p56 = por %p54, %p55
      %s57 = ssub.s32 %s16, %s28
      %p58 = scmp.eq.s32.totalorder %s57, 0
      %s60 = sadd.s32 %s59, 1
      %s61 = scalar_select %p58, %s59, %s60
      %p64 = pneg %p58
      %p65 = scmp.eq.s32.totalorder %s9, 1
      %p66 = por %p64, %p65
      %p67 = scmp.ne.s32.totalorder %s59, %s62
      %p68 = scmp.eq.s32.totalorder %s9, 0
      %p69 = por %p67, %p68
      %p70 = scmp.ne.s32.totalorder %s59, %s62
      %p71 = scmp.eq.s32.totalorder %s14, 1
      %p72 = por %p70, %p71
      %p73 = scmp.ne.s32.totalorder %s62, %s63
      %p74 = scmp.eq.s32.totalorder %s14, 0
      %p75 = por %p73, %p74
      %p76 = scmp.ne.s32.totalorder %s62, %s63
      %p77 = scmp.eq.s32.totalorder %s15, 1
      %p78 = por %p76, %p77
      %p80 = scmp.ne.s32.totalorder %s63, %s79
      %p81 = scmp.eq.s32.totalorder %s15, 0
      %p82 = por %p80, %p81
      %s83 = ssub.s32 %s16, %s28
      %s84 = ssub.s32 %s17, %s24
      %s85 = sor.u32 %s83, %s84
      %p86 = scmp.eq.s32.totalorder %s85, 0
      %s88 = sadd.s32 %s87, 1
      %s89 = scalar_select %p86, %s87, %s88
      %p92 = pneg %p86
      %p93 = scmp.eq.s32.totalorder %s9, 1
      %p94 = por %p92, %p93
      %p95 = scmp.ne.s32.totalorder %s87, %s90
      %p96 = scmp.eq.s32.totalorder %s9, 0
      %p97 = por %p95, %p96
      %p98 = scmp.ne.s32.totalorder %s87, %s90
      %p99 = scmp.eq.s32.totalorder %s14, 1
      %p100 = por %p98, %p99
      %p101 = scmp.ne.s32.totalorder %s90, %s91
      %p102 = scmp.eq.s32.totalorder %s14, 0
      %p103 = por %p101, %p102
      %p104 = scmp.ne.s32.totalorder %s90, %s91
      %p105 = scmp.eq.s32.totalorder %s15, 1
      %p106 = por %p104, %p105
      %p108 = scmp.ne.s32.totalorder %s91, %s107
      %p109 = scmp.eq.s32.totalorder %s15, 0
      %p110 = por %p108, %p109
      %p111 = scmp.le.s32.totalorder 1, %s9
      %p112 = scmp.lt.s32.totalorder %s9, 3
      %p113 = pnand %p111, %p112
      %p114 = pneg %p113
      // Predicated region
      $region9: #{attention_no_mask.3} parent=5 // pred_check
        _
      $region10: #{attention_no_mask.3} parent=5 // pred_check_branch
        %116 = sbr.rel (%p113) target = $region12
      $region11: #{attention_no_mask.3} parent=5 // pred_region
        %s117 = ssub.s32 %s9, 1
      $region12: #{attention_no_mask.3} parent=5 // pred_fallthru
        _
      %p118 = scmp.lt.s32.totalorder %s9, 2
      // Predicated region
      $region13: #{attention_no_mask.3} parent=5 // pred_check
        %p119 = pneg %p118
      $region14: #{attention_no_mask.3} parent=5 // pred_check_branch
        %121 = sbr.rel (%p119) target = $region16
      $region15: #{attention_no_mask.3} parent=5 // pred_region
        // Predicated region
        $region17: #{attention_no_mask.3} parent=15 // pred_check
          %p122 = pneg %p43
        $region18: #{attention_no_mask.3} parent=15 // pred_check_branch
          %124 = sbr.rel (%p122) target = $region20
        $region19: #{attention_no_mask.3} parent=15 // pred_region
          %s125 = smul.u32 2, %s17
          %p126 = scmp.lt.s32.totalorder %s16, 1
          %s127 = scalar_select %p126, %s16, 1
          %p128 = scmp.lt.s32.totalorder %s125, 1
          %s129 = scalar_select %p128, %s125, 1
          %s130 = smul.addr %s127, 2
          %s131 = sadd.s32 %s129, %s130
          %s132 = smul.addr %s131, 8
          %s133 = scalar_lea.vmem %s0, %s132
          %s134 = smul.u32 2, %s17
        $region20: #{attention_no_mask.3} parent=15 // pred_fallthru
          _
        // Predicated region
        $region21: #{attention_no_mask.3} parent=15 // pred_check
          %p135 = pneg %p69
        $region22: #{attention_no_mask.3} parent=15 // pred_check_branch
          %137 = sbr.rel (%p135) target = $region24
        $region23: #{attention_no_mask.3} parent=15 // pred_region
          %p138 = scmp.lt.s32.totalorder %s16, 1
          %s139 = scalar_select %p138, %s16, 1
          %s140 = scalar_lea.vmem %s1, %s139
        $region24: #{attention_no_mask.3} parent=15 // pred_fallthru
          _
      $region16: #{attention_no_mask.3} parent=5 // pred_fallthru
        _
      %p141 = scmp.le.s32.totalorder 1, %s9
      %p142 = scmp.lt.s32.totalorder %s9, 3
      %p143 = pnand %p141, %p142
      %p144 = pneg %p143
      // Predicated region
      $region25: #{attention_no_mask.3} parent=5 // pred_check
        _
      $region26: #{attention_no_mask.3} parent=5 // pred_check_branch
        %146 = sbr.rel (%p143) target = $region28
      $region27: #{attention_no_mask.3} parent=5 // pred_region
        %s147 = ssub.s32 %s9, 1
        %s148 = smul.u32 2, %s19
        %p149 = scmp.lt.s32.totalorder %s18, 1
        %s150 = scalar_select %p149, %s18, 1
        %p151 = scmp.lt.s32.totalorder %s148, 1
        %s152 = scalar_select %p151, %s148, 1
        %s153 = smul.addr %s150, 2
        %s154 = sadd.s32 %s152, %s153
        %s155 = smul.addr %s154, 8
        %s156 = scalar_lea.vmem %s0, %s155
        %p157 = pneg %p49
        %p158 = pneg %p46
        %p159 = scmp.lt.s32.totalorder %s18, 1
        %s160 = scalar_select %p159, %s18, 1
        %s161 = scalar_lea.vmem %s1, %s160
        %p162 = pneg %p75
        %p163 = pneg %p72
        %p164 = pneg %p103
        %p165 = pneg %p100
        %s166 = sand.u32 %s90, 1
        %s167 = sand.u32 %s90, 1
        %s168 = smul.addr %s167, 16
        %s169 = scalar_lea.vmem [#allocation2], %s168
        %s170 = smul.u32 2, %s19
        %p171 = scmp.lt.s32.totalorder %s18, 1
        %s172 = scalar_select %p171, %s18, 1
        %p173 = scmp.lt.s32.totalorder %s170, 1
        %s174 = scalar_select %p173, %s170, 1
        %s175 = smul.addr %s172, 2
        %s176 = sadd.s32 %s174, %s175
        %s177 = smul.addr %s176, 8
        %s178 = scalar_lea.vmem %s0, %s177
        %s179 = smul.u32 2, %s19
        %p180 = scmp.lt.s32.totalorder %s18, 1
        %s181 = scalar_select %p180, %s18, 1
        %s182 = scalar_lea.vmem %s1, %s181
        %s183 = smul.u32 2, %s19
        %v184 = vld [vmem:[%s178] sm:$0xff]
        %v185 = vld [vmem:[%s178 + $0x8] sm:$0xff]
        %v186 = vld [vmem:[%s182] sm:$0x1]
        %v188 = vlaneseq
        %v189 = vshrl.u32 %v188, 7
        %v190 = vsub.s32 0, %v189
        %v191 = vrot.slane %v186, %v190
        %v193 = vmul.f32 %v184, %v191
        %v194 = vmul.f32 %v185, %v191
        %195 = vst [vmem:[%s169] sm:$0xff] %v193
        %196 = vst [vmem:[%s169 + $0x8] sm:$0xff] %v194
        %s197 = sand.u32 %s90, 1
        %s198 = sand.u32 %s90, 1
        %s199 = smul.addr %s198, 16
        %s200 = scalar_lea.vmem [#allocation2], %s199
        // Predicated region
        $region29: #{attention_no_mask.3} parent=27 // pred_check
          %p201 = pneg %p100
        $region30: #{attention_no_mask.3} parent=27 // pred_check_branch
          %203 = sbr.rel (%p201) target = $region32
        $region31: #{attention_no_mask.3} parent=27 // pred_region
          %s204 = smul.u32 2, %s19
          %s205 = smul.addr %s204, 4
          %s206 = sadd.s32 3, %s205
          %s207 = smul.addr %s18, 8
          %s208 = sadd.s32 %s206, %s207
          %s209 = smul.addr %s208, 8
          %s210 = scalar_lea.vmem %s3, %s209
          // Predicated region
          $region33: #{attention_no_mask.3} parent=31 // pred_check
            _
          $region34: #{attention_no_mask.3} parent=31 // pred_check_branch
            %212 = sbr.rel (0) target = $region36
          $region35: #{attention_no_mask.3} parent=31 // pred_region
            // Predicated region
            $region37: #{attention_no_mask.3} parent=35 // pred_check
              _
            $region38: #{attention_no_mask.3} parent=35 // pred_check_branch
              %214 = sbr.rel (0) target = $region40
            $region39: #{attention_no_mask.3} parent=35 // pred_region
              // Predicated region
              $region52: #{attention_no_mask.3} parent=39 // pred_check
                _
              $region53: #{attention_no_mask.3} parent=39 // pred_check_branch
                %231 = sbr.rel (0) target = $region55
              $region54: #{attention_no_mask.3} parent=39 // pred_region
                loop: start=0, step=1, limit=1
                $region56: #{attention_no_mask.3} parent=54 // loop_pre_header
                  _
                $region57: #{attention_no_mask.3} parent=54 // loop_header
                  %s233 = sphi 0, %s237
                  %p234 = scmp.ge.s32.totalorder %s233, 1
                  %s238 = sphi %s200, %s200
                  %s239 = sphi %s210, %s210
                $region58: #{attention_no_mask.3} parent=54 // loop_header_branch
                  %236 = sbr.rel (%p234) target = $region62
                $region59: #{attention_no_mask.3} parent=54 // loop_body
                  %v240 = vld [vmem:[%s238] sm:$0xff]
                  %241 = vst [vmem:[%s239] sm:$0xff] %v240
                  %v242 = vld [vmem:[%s238 + $0x8] sm:$0xff]
                  %243 = vst [vmem:[%s239 + $0x20] sm:$0xff] %v242
                $region60: #{attention_no_mask.3} parent=54 // loop_footer
                  %s237 = sadd.s32 1, %s233
                $region61: #{attention_no_mask.3} parent=54 // loop_footer_branch
                  %232 = sbr.rel target = $region57
                $region62: #{attention_no_mask.3} parent=54 // loop_exit
                  _
              $region55: #{attention_no_mask.3} parent=39 // pred_fallthru
                _
              // Predicated region
              $region63: #{attention_no_mask.3} parent=39 // pred_check
                _
              $region64: #{attention_no_mask.3} parent=39 // pred_check_branch
                %245 = sbr.rel target = $region66
              $region65: #{attention_no_mask.3} parent=39 // pred_region
                _
              $region66: #{attention_no_mask.3} parent=39 // pred_fallthru
                _
            $region40: #{attention_no_mask.3} parent=35 // pred_fallthru
              _
            // Predicated region
            $region41: #{attention_no_mask.3} parent=35 // pred_check
              _
            $region42: #{attention_no_mask.3} parent=35 // pred_check_branch
              %216 = sbr.rel target = $region44
            $region43: #{attention_no_mask.3} parent=35 // pred_region
              loop: start=0, step=1, limit=1
              $region45: #{attention_no_mask.3} parent=43 // loop_pre_header
                _
              $region46: #{attention_no_mask.3} parent=43 // loop_header
                %s219 = sphi 0, %s223
                %p220 = scmp.ge.s32.totalorder %s219, 1
                %s224 = sphi %s200, %s200
                %s225 = sphi %s210, %s210
              $region47: #{attention_no_mask.3} parent=43 // loop_header_branch
                %222 = sbr.rel (%p220) target = $region51
              $region48: #{attention_no_mask.3} parent=43 // loop_body
                %v226 = vld [vmem:[%s224] sm:$0xff]
                %227 = vst [vmem:[%s225] sm:$0xff] %v226
                %v228 = vld [vmem:[%s224 + $0x8] sm:$0xff]
                %229 = vst [vmem:[%s225 + $0x20] sm:$0xff] %v228
              $region49: #{attention_no_mask.3} parent=43 // loop_footer
                %s223 = sadd.s32 1, %s219
              $region50: #{attention_no_mask.3} parent=43 // loop_footer_branch
                %218 = sbr.rel target = $region46
              $region51: #{attention_no_mask.3} parent=43 // loop_exit
                _
            $region44: #{attention_no_mask.3} parent=35 // pred_fallthru
              _
          $region36: #{attention_no_mask.3} parent=31 // pred_fallthru
            _
          %246 = vnop
        $region32: #{attention_no_mask.3} parent=27 // pred_fallthru
          _
      $region28: #{attention_no_mask.3} parent=5 // pred_fallthru
        _
      %p247 = scmp.le.s32.totalorder 2, %s9
      // Predicated region
      $region67: #{attention_no_mask.3} parent=5 // pred_check
        %p248 = pneg %p247
      $region68: #{attention_no_mask.3} parent=5 // pred_check_branch
        %250 = sbr.rel (%p248) target = $region70
      $region69: #{attention_no_mask.3} parent=5 // pred_region
        %s251 = ssub.s32 %s9, 2
        // Predicated region
        $region71: #{attention_no_mask.3} parent=69 // pred_check
          %p252 = pneg %p106
        $region72: #{attention_no_mask.3} parent=69 // pred_check_branch
          %254 = sbr.rel (%p252) target = $region74
        $region73: #{attention_no_mask.3} parent=69 // pred_region
          %s255 = sand.u32 %s91, 1
          %s256 = sand.u32 %s91, 1
          %s257 = smul.addr %s256, 16
          %s258 = scalar_lea.vmem [#allocation2], %s257
        $region74: #{attention_no_mask.3} parent=69 // pred_fallthru
          _
      $region70: #{attention_no_mask.3} parent=5 // pred_fallthru
        _
    $region6: #{attention_no_mask.3} parent=1 // loop_footer
      %s13 = sadd.s32 1, %s9
    $region7: #{attention_no_mask.3} parent=1 // loop_footer_branch
      %8 = sbr.rel target = $region3
    $region8: #{attention_no_mask.3} parent=1 // loop_exit
      _

// kernel: attention_no_mask.2
$region0: #{attention_no_mask.2}
  #allocation0 [shape = 'u32[]', space=smem, size = 0x4, offset = 0x4, fixed_abs, tag = 'smem constant byte address 0x4 - core index']
  #allocation1 [shape = 'u32[144,128]{1,0:T(1,128)}', space=vmem, size = 0x12000, scoped, tag = 'internal scratch']
  %s0 = inlined_call_operand.vmem [shape: f32[2,16,128], index: 0, kind: input, shape index: {}]
  %s1 = inlined_call_operand.vmem [shape: bf16[2,128,128], index: 1, kind: input, shape index: {}]
  %s2 = inlined_call_operand.vmem [shape: f32[2,1,128], index: 2, kind: input, shape index: {}]
  %s3 = inlined_call_operand.vmem [shape: f32[2,128], index: 3, kind: input, shape index: {}]
  %s4 = inlined_call_operand.vmem [shape: f32[2,16,512], index: 4, kind: output, shape index: {0}]
  %s5 = inlined_call_operand.vmem [shape: f32[2,16,1], index: 5, kind: output, shape index: {1}]
  %6 = xla_tuple %s4, %s5
  %s7 = sld [smem:[#allocation0]]
  $region76: #{attention_no_mask.2} parent=0
    _
  %s9 = ssub.s32 1, %s7
  %s10 = scalar_select 0, %s9, %s7
  $region1: #{attention_no_mask.2} parent=0
    #allocation2 [shape = 'u8[49152]{0}', space=vmem, size = 0xc000, scoped, tag = 'output window, operand 0']
    loop: start=0, step=1, limit=4
    $region2: #{attention_no_mask.2} parent=1 // loop_pre_header
      _
    $region3: #{attention_no_mask.2} parent=1 // loop_header
      %s12 = sphi 0, %s16
      %p13 = scmp.ge.s32.totalorder %s12, 4
      %s19 = sphi 0, %s31
      %s20 = sphi 0, %s27
      %s21 = sphi 0, %s19
      %s22 = sphi 0, %s20
      %s23 = sphi 0, %s21
      %s24 = sphi 0, %s22
      %s36 = sphi 0, %s38
      %s39 = sphi 0, %s36
      %s40 = sphi 0, %s39
      %s56 = sphi 0, %s40
      %s62 = sphi 0, %s64
      %s65 = sphi 0, %s62
      %s66 = sphi 0, %s65
      %s82 = sphi 0, %s66
      %s88 = sphi 0, %s90
      %s91 = sphi 0, %s88
      %s92 = sphi 0, %s91
      %s108 = sphi 0, %s92
      %s112 = sphi 0, %s112
      %s114 = sphi 0, %s112
      %s115 = sphi 0, %s114
      %s129 = sphi 0, %s115
      %s137 = sphi 0, %s139
      %s140 = sphi 0, %s137
      %s141 = sphi 0, %s140
      %s157 = sphi 0, %s141
      %s165 = sphi 0, %s167
      %s168 = sphi 0, %s165
      %s169 = sphi 0, %s168
      %s185 = sphi 0, %s169
    $region4: #{attention_no_mask.2} parent=1 // loop_header_branch
      %15 = sbr.rel (%p13) target = $region8
    $region5: #{attention_no_mask.2} parent=1 // loop_body
      %s17 = ssub.s32 %s12, 1
      %s18 = ssub.s32 %s12, 2
      %s25 = sadd.s32 1, %s20
      %p26 = scmp.ge.s32.totalorder %s25, 1
      %s27 = scalar_select %p26, 0, %s25
      %s28 = sadd.s32 1, %s19
      %s29 = scalar_select %p26, %s28, %s19
      %p30 = scmp.ge.s32.totalorder %s29, 2
      %s31 = scalar_select %p30, 0, %s29
      %s32 = ssub.s32 %s19, %s31
      %s33 = ssub.s32 %s20, %s27
      %s34 = sor.u32 %s32, %s33
      %p35 = scmp.eq.s32.totalorder %s34, 0
      %s37 = sadd.s32 %s36, 1
      %s38 = scalar_select %p35, %s36, %s37
      %p41 = pneg %p35
      %p42 = scmp.eq.s32.totalorder %s12, 1
      %p43 = por %p41, %p42
      %p44 = scmp.ne.s32.totalorder %s36, %s39
      %p45 = scmp.eq.s32.totalorder %s12, 0
      %p46 = por %p44, %p45
      %p47 = scmp.ne.s32.totalorder %s36, %s39
      %p48 = scmp.eq.s32.totalorder %s17, 1
      %p49 = por %p47, %p48
      %p50 = scmp.ne.s32.totalorder %s39, %s40
      %p51 = scmp.eq.s32.totalorder %s17, 0
      %p52 = por %p50, %p51
      %p53 = scmp.ne.s32.totalorder %s39, %s40
      %p54 = scmp.eq.s32.totalorder %s18, 1
      %p55 = por %p53, %p54
      %p57 = scmp.ne.s32.totalorder %s40, %s56
      %p58 = scmp.eq.s32.totalorder %s18, 0
      %p59 = por %p57, %p58
      %s60 = ssub.s32 %s19, %s31
      %p61 = scmp.eq.s32.totalorder %s60, 0
      %s63 = sadd.s32 %s62, 1
      %s64 = scalar_select %p61, %s62, %s63
      %p67 = pneg %p61
      %p68 = scmp.eq.s32.totalorder %s12, 1
      %p69 = por %p67, %p68
      %p70 = scmp.ne.s32.totalorder %s62, %s65
      %p71 = scmp.eq.s32.totalorder %s12, 0
      %p72 = por %p70, %p71
      %p73 = scmp.ne.s32.totalorder %s62, %s65
      %p74 = scmp.eq.s32.totalorder %s17, 1
      %p75 = por %p73, %p74
      %p76 = scmp.ne.s32.totalorder %s65, %s66
      %p77 = scmp.eq.s32.totalorder %s17, 0
      %p78 = por %p76, %p77
      %p79 = scmp.ne.s32.totalorder %s65, %s66
      %p80 = scmp.eq.s32.totalorder %s18, 1
      %p81 = por %p79, %p80
      %p83 = scmp.ne.s32.totalorder %s66, %s82
      %p84 = scmp.eq.s32.totalorder %s18, 0
      %p85 = por %p83, %p84
      %s86 = ssub.s32 %s19, %s31
      %p87 = scmp.eq.s32.totalorder %s86, 0
      %s89 = sadd.s32 %s88, 1
      %s90 = scalar_select %p87, %s88, %s89
      %p93 = pneg %p87
      %p94 = scmp.eq.s32.totalorder %s12, 1
      %p95 = por %p93, %p94
      %p96 = scmp.ne.s32.totalorder %s88, %s91
      %p97 = scmp.eq.s32.totalorder %s12, 0
      %p98 = por %p96, %p97
      %p99 = scmp.ne.s32.totalorder %s88, %s91
      %p100 = scmp.eq.s32.totalorder %s17, 1
      %p101 = por %p99, %p100
      %p102 = scmp.ne.s32.totalorder %s91, %s92
      %p103 = scmp.eq.s32.totalorder %s17, 0
      %p104 = por %p102, %p103
      %p105 = scmp.ne.s32.totalorder %s91, %s92
      %p106 = scmp.eq.s32.totalorder %s18, 1
      %p107 = por %p105, %p106
      %p109 = scmp.ne.s32.totalorder %s92, %s108
      %p110 = scmp.eq.s32.totalorder %s18, 0
      %p111 = por %p109, %p110
      %s113 = sadd.s32 %s112, 1
      %p116 = scmp.eq.s32.totalorder %s12, 1
      %p117 = scmp.ne.s32.totalorder %s112, %s114
      %p118 = scmp.eq.s32.totalorder %s12, 0
      %p119 = por %p117, %p118
      %p120 = scmp.ne.s32.totalorder %s112, %s114
      %p121 = scmp.eq.s32.totalorder %s17, 1
      %p122 = por %p120, %p121
      %p123 = scmp.ne.s32.totalorder %s114, %s115
      %p124 = scmp.eq.s32.totalorder %s17, 0
      %p125 = por %p123, %p124
      %p126 = scmp.ne.s32.totalorder %s114, %s115
      %p127 = scmp.eq.s32.totalorder %s18, 1
      %p128 = por %p126, %p127
      %p130 = scmp.ne.s32.totalorder %s115, %s129
      %p131 = scmp.eq.s32.totalorder %s18, 0
      %p132 = por %p130, %p131
      %s133 = ssub.s32 %s19, %s31
      %s134 = ssub.s32 %s20, %s27
      %s135 = sor.u32 %s133, %s134
      %p136 = scmp.eq.s32.totalorder %s135, 0
      %s138 = sadd.s32 %s137, 1
      %s139 = scalar_select %p136, %s137, %s138
      %p142 = pneg %p136
      %p143 = scmp.eq.s32.totalorder %s12, 1
      %p144 = por %p142, %p143
      %p145 = scmp.ne.s32.totalorder %s137, %s140
      %p146 = scmp.eq.s32.totalorder %s12, 0
      %p147 = por %p145, %p146
      %p148 = scmp.ne.s32.totalorder %s137, %s140
      %p149 = scmp.eq.s32.totalorder %s17, 1
      %p150 = por %p148, %p149
      %p151 = scmp.ne.s32.totalorder %s140, %s141
      %p152 = scmp.eq.s32.totalorder %s17, 0
      %p153 = por %p151, %p152
      %p154 = scmp.ne.s32.totalorder %s140, %s141
      %p155 = scmp.eq.s32.totalorder %s18, 1
      %p156 = por %p154, %p155
      %p158 = scmp.ne.s32.totalorder %s141, %s157
      %p159 = scmp.eq.s32.totalorder %s18, 0
      %p160 = por %p158, %p159
      %s161 = ssub.s32 %s19, %s31
      %s162 = ssub.s32 %s20, %s27
      %s163 = sor.u32 %s161, %s162
      %p164 = scmp.eq.s32.totalorder %s163, 0
      %s166 = sadd.s32 %s165, 1
      %s167 = scalar_select %p164, %s165, %s166
      %p170 = pneg %p164
      %p171 = scmp.eq.s32.totalorder %s12, 1
      %p172 = por %p170, %p171
      %p173 = scmp.ne.s32.totalorder %s165, %s168
      %p174 = scmp.eq.s32.totalorder %s12, 0
      %p175 = por %p173, %p174
      %p176 = scmp.ne.s32.totalorder %s165, %s168
      %p177 = scmp.eq.s32.totalorder %s17, 1
      %p178 = por %p176, %p177
      %p179 = scmp.ne.s32.totalorder %s168, %s169
      %p180 = scmp.eq.s32.totalorder %s17, 0
      %p181 = por %p179, %p180
      %p182 = scmp.ne.s32.totalorder %s168, %s169
      %p183 = scmp.eq.s32.totalorder %s18, 1
      %p184 = por %p182, %p183
      %p186 = scmp.ne.s32.totalorder %s169, %s185
      %p187 = scmp.eq.s32.totalorder %s18, 0
      %p188 = por %p186, %p187
      %p189 = scmp.le.s32.totalorder 1, %s12
      %p190 = scmp.lt.s32.totalorder %s12, 3
      %p191 = pnand %p189, %p190
      %p192 = pneg %p191
      // Predicated region
      $region9: #{attention_no_mask.2} parent=5 // pred_check
        _
      $region10: #{attention_no_mask.2} parent=5 // pred_check_branch
        %194 = sbr.rel (%p191) target = $region12
      $region11: #{attention_no_mask.2} parent=5 // pred_region
        %s195 = ssub.s32 %s12, 1
        // Predicated region
        $region13: #{attention_no_mask.2} parent=11 // pred_check
          %p196 = pneg %p125
        $region14: #{attention_no_mask.2} parent=11 // pred_check_branch
          %198 = sbr.rel (%p196) target = $region16
        $region15: #{attention_no_mask.2} parent=11 // pred_region
          _
        $region16: #{attention_no_mask.2} parent=11 // pred_fallthru
          _
      $region12: #{attention_no_mask.2} parent=5 // pred_fallthru
        _
      %p199 = scmp.lt.s32.totalorder %s12, 2
      // Predicated region
      $region17: #{attention_no_mask.2} parent=5 // pred_check
        %p200 = pneg %p199
      $region18: #{attention_no_mask.2} parent=5 // pred_check_branch
        %202 = sbr.rel (%p200) target = $region20
      $region19: #{attention_no_mask.2} parent=5 // pred_region
        // Predicated region
        $region21: #{attention_no_mask.2} parent=19 // pred_check
          %p203 = pneg %p46
        $region22: #{attention_no_mask.2} parent=19 // pred_check_branch
          %205 = sbr.rel (%p203) target = $region24
        $region23: #{attention_no_mask.2} parent=19 // pred_region
          %s206 = smul.u32 2, %s20
          %p207 = scmp.lt.s32.totalorder %s19, 1
          %s208 = scalar_select %p207, %s19, 1
          %p209 = scmp.lt.s32.totalorder %s206, 1
          %s210 = scalar_select %p209, %s206, 1
          %s211 = smul.addr %s208, 2
          %s212 = sadd.s32 %s210, %s211
          %s213 = smul.addr %s212, 8
          %s214 = scalar_lea.vmem %s0, %s213
          %s215 = smul.u32 2, %s20
        $region24: #{attention_no_mask.2} parent=19 // pred_fallthru
          _
        // Predicated region
        $region25: #{attention_no_mask.2} parent=19 // pred_check
          %p216 = pneg %p72
        $region26: #{attention_no_mask.2} parent=19 // pred_check_branch
          %218 = sbr.rel (%p216) target = $region28
        $region27: #{attention_no_mask.2} parent=19 // pred_region
          %p219 = scmp.lt.s32.totalorder %s19, 1
          %s220 = scalar_select %p219, %s19, 1
          %s221 = smul.addr %s220, 16
          %s222 = smul.addr %s221, 4
          %s223 = scalar_lea.vmem %s1, %s222
        $region28: #{attention_no_mask.2} parent=19 // pred_fallthru
          _
        // Predicated region
        $region29: #{attention_no_mask.2} parent=19 // pred_check
          %p224 = pneg %p98
        $region30: #{attention_no_mask.2} parent=19 // pred_check_branch
          %226 = sbr.rel (%p224) target = $region32
        $region31: #{attention_no_mask.2} parent=19 // pred_region
          %p227 = scmp.lt.s32.totalorder %s19, 1
          %s228 = scalar_select %p227, %s19, 1
          %s229 = scalar_lea.vmem %s2, %s228
        $region32: #{attention_no_mask.2} parent=19 // pred_fallthru
          _
      $region20: #{attention_no_mask.2} parent=5 // pred_fallthru
        _
      %p230 = scmp.le.s32.totalorder 1, %s12
      %p231 = scmp.lt.s32.totalorder %s12, 3
      %p232 = pnand %p230, %p231
      %p233 = pneg %p232
      // Predicated region
      $region33: #{attention_no_mask.2} parent=5 // pred_check
        _
      $region34: #{attention_no_mask.2} parent=5 // pred_check_branch
        %235 = sbr.rel (%p232) target = $region36
      $region35: #{attention_no_mask.2} parent=5 // pred_region
        %s236 = ssub.s32 %s12, 1
        %s237 = smul.u32 2, %s22
        %p238 = scmp.lt.s32.totalorder %s21, 1
        %s239 = scalar_select %p238, %s21, 1
        %p240 = scmp.lt.s32.totalorder %s237, 1
        %s241 = scalar_select %p240, %s237, 1
        %s242 = smul.addr %s239, 2
        %s243 = sadd.s32 %s241, %s242
        %s244 = smul.addr %s243, 8
        %s245 = scalar_lea.vmem %s0, %s244
        %p246 = pneg %p52
        %p247 = pneg %p49
        %p248 = scmp.lt.s32.totalorder %s21, 1
        %s249 = scalar_select %p248, %s21, 1
        %s250 = smul.addr %s249, 16
        %s251 = smul.addr %s250, 4
        %s252 = scalar_lea.vmem %s1, %s251
        %p253 = pneg %p78
        %p254 = pneg %p75
        %p255 = scmp.lt.s32.totalorder %s21, 1
        %s256 = scalar_select %p255, %s21, 1
        %s257 = scalar_lea.vmem %s2, %s256
        %p258 = pneg %p104
        %p259 = pneg %p101
        %p260 = pneg %p125
        %p261 = pneg %p122
        %p262 = pneg %p153
        %p263 = pneg %p150
        %s264 = sand.u32 %s140, 1
        %s265 = sand.u32 %s140, 1
        %s266 = smul.addr %s265, 48
        %s267 = scalar_lea.vmem [#allocation2], %s266
        %p268 = pneg %p181
        %p269 = pneg %p178
        %s270 = smul.u32 2, %s22
        %p271 = scmp.lt.s32.totalorder %s21, 1
        %s272 = scalar_select %p271, %s21, 1
        %p273 = scmp.lt.s32.totalorder %s270, 1
        %s274 = scalar_select %p273, %s270, 1
        %s275 = smul.addr %s272, 2
        %s276 = sadd.s32 %s274, %s275
        %s277 = smul.addr %s276, 8
        %s278 = scalar_lea.vmem %s5, %s277
        %s279 = smul.u32 2, %s22
        %p280 = scmp.lt.s32.totalorder %s21, 1
        %s281 = scalar_select %p280, %s21, 1
        %p282 = scmp.lt.s32.totalorder %s279, 1
        %s283 = scalar_select %p282, %s279, 1
        %s284 = smul.addr %s281, 2
        %s285 = sadd.s32 %s283, %s284
        %s286 = smul.addr %s285, 8
        %s287 = scalar_lea.vmem %s0, %s286
        %s288 = smul.u32 2, %s22
        %p289 = scmp.lt.s32.totalorder %s21, 1
        %s290 = scalar_select %p289, %s21, 1
        %s291 = smul.addr %s290, 16
        %s292 = smul.addr %s291, 4
        %s293 = scalar_lea.vmem %s1, %s292
        %p294 = scmp.lt.s32.totalorder %s21, 1
        %s295 = scalar_select %p294, %s21, 1
        %s296 = scalar_lea.vmem %s2, %s295
        %s297 = smul.u32 2, %s22
        %s298 = smul.u32 2, %s22
        %p299 = scmp.lt.s32.totalorder %s21, 1
        %s300 = scalar_select %p299, %s21, 1
        %p301 = scmp.lt.s32.totalorder %s298, 1
        %s302 = scalar_select %p301, %s298, 1
        %s303 = smul.addr %s300, 2
        %s304 = sadd.s32 %s302, %s303
        %s305 = smul.addr %s304, 8
        %s306 = scalar_lea.vmem %s5, %s305
        %s307 = smul.u32 2, %s22
        %v309 = vld [vmem:[%s287] sm:$0xff]
        %v310 = vld [vmem:[%s287 + $0x8] sm:$0xff]
        %v311 = vld [vmem:[%s293] sm:$0xf]
        %v312 = vld [vmem:[%s293 + $0x4] sm:$0xf]
        %v313 = vld [vmem:[%s293 + $0x8] sm:$0xf]
        %v314 = vld [vmem:[%s293 + $0xc] sm:$0xf]
        %v315 = vld [vmem:[%s293 + $0x10] sm:$0xf]
        %v316 = vld [vmem:[%s293 + $0x14] sm:$0xf]
        %v317 = vld [vmem:[%s293 + $0x18] sm:$0xf]
        %v318 = vld [vmem:[%s293 + $0x1c] sm:$0xf]
        %v319 = vld [vmem:[%s293 + $0x20] sm:$0xf]
        %v320 = vld [vmem:[%s293 + $0x24] sm:$0xf]
        %v321 = vld [vmem:[%s293 + $0x28] sm:$0xf]
        %v322 = vld [vmem:[%s293 + $0x2c] sm:$0xf]
        %v323 = vld [vmem:[%s293 + $0x30] sm:$0xf]
        %v324 = vld [vmem:[%s293 + $0x34] sm:$0xf]
        %v325 = vld [vmem:[%s293 + $0x38] sm:$0xf]
        %v326 = vld [vmem:[%s293 + $0x3c] sm:$0xf]
        %v327 = vld [vmem:[%s3] sm:$0x1]
        %v328 = vld [vmem:[%s3 + $0x1] sm:$0x1]
        %v329 = vlaneseq
        %v330 = vshrl.u32 %v329, 7
        %v331 = vsub.s32 0, %v330
        %v332 = vrot.slane %v327, %v331
        %v333 = vmul.f32 %v309, %v332
        %v334 = vmul.f32 %v310, %v332
        %335 = vadd.xlane.f32.xlu0 %v333
        %v336 = vpop.xlane.xlu0 %335
        %337 = vadd.xlane.f32.xlu0 %v334
        %v338 = vpop.xlane.xlu0 %337
        %v339 = vlaneseq
        %v340 = vshrl.u32 %v339, 7
        %v341 = vsub.s32 0, %v340
        %v342 = vrot.slane %v328, %v341
        %v343 = vmul.f32 %v309, %v342
        %v344 = vmul.f32 %v310, %v342
        %v345 = vpack.c.bf16 %v344, %v343
        %v362 = vunpack.c.l.b16 %v311
        %v363 = vunpack.c.l.b16 %v312
        %v364 = vunpack.c.l.b16 %v313
        %v365 = vunpack.c.l.b16 %v314
        %v366 = vunpack.c.l.b16 %v315
        %v367 = vunpack.c.l.b16 %v316
        %v368 = vunpack.c.l.b16 %v317
        %v369 = vunpack.c.l.b16 %v318
        %v370 = vunpack.c.l.b16 %v319
        %v371 = vunpack.c.l.b16 %v320
        %v372 = vunpack.c.l.b16 %v321
        %v373 = vunpack.c.l.b16 %v322
        %v374 = vunpack.c.l.b16 %v323
        %v375 = vunpack.c.l.b16 %v324
        %v376 = vunpack.c.l.b16 %v325
        %v377 = vunpack.c.l.b16 %v326
        %v378 = vpack.c.b16 %v363, %v362
        %v379 = vpack.c.b16 %v365, %v364
        %v380 = vpack.c.b16 %v367, %v366
        %v381 = vpack.c.b16 %v369, %v368
        %v382 = vpack.c.b16 %v371, %v370
        %v383 = vpack.c.b16 %v373, %v372
        %v384 = vpack.c.b16 %v375, %v374
        %v385 = vpack.c.b16 %v377, %v376
        %394 = vmatprep.subr.bf16.mxu0 0
        %395 = vmatpush1.bf16.xpose.msra.mxu0 %v378
        %396 = vmatprep.subr.bf16.mxu0 0
        %397 = vmatpush1.bf16.xpose.msra.mxu0 %v379
        %398 = vmatprep.subr.bf16.mxu0 0
        %399 = vmatpush1.bf16.xpose.msra.mxu0 %v380
        %400 = vmatprep.subr.bf16.mxu0 0
        %401 = vmatpush1.bf16.xpose.msra.mxu0 %v381
        %402 = vmatprep.subr.bf16.mxu0 0
        %403 = vmatpush1.bf16.xpose.msra.mxu0 %v382
        %404 = vmatprep.subr.bf16.mxu0 0
        %405 = vmatpush1.bf16.xpose.msra.mxu0 %v383
        %406 = vmatprep.subr.bf16.mxu0 0
        %407 = vmatpush1.bf16.xpose.msra.mxu0 %v384
        %408 = vmatprep.subr.bf16.mxu0 0
        %409 = vmatpush1.bf16.xpose.msra.mxu0 %v385
        %410 = vmatprep.subr.bf16.mxu0 0
        %411 = vmatpush1.bf16.xpose.msra.mxu0 0
        %412 = vmatprep.subr.bf16.mxu0 0
        %413 = vmatpush1.bf16.xpose.msra.mxu0 0
        %414 = vmatprep.subr.bf16.mxu0 0
        %415 = vmatpush1.bf16.xpose.msra.mxu0 0
        %416 = vmatprep.subr.bf16.mxu0 0
        %417 = vmatpush1.bf16.xpose.msra.mxu0 0
        %418 = vmatprep.subr.bf16.mxu0 0
        %419 = vmatpush1.bf16.xpose.msra.mxu0 0
        %420 = vmatprep.subr.bf16.mxu0 0
        %421 = vmatpush1.bf16.xpose.msra.mxu0 0
        %422 = vmatprep.subr.bf16.mxu0 0
        %423 = vmatpush1.bf16.xpose.msra.mxu0 0
        %424 = vmatprep.subr.bf16.mxu0 0
        %425 = vmatpush1.bf16.xpose.msra.mxu0 0
        %426 = vmatprep.mubr.bf16.mxu0 0
        %427 = vmatmul.mubr.bf16.gmra.mrb[0].mxu0 %v345
        %v428 = vpop.f32.mrb[0].mxu0
        %v429 = vadd.f32 %v336, %v428
        %v430 = vpop.f32.mrb[0].mxu0
        %v431 = vpop.f32.mrb[0].mxu0
        %v432 = vadd.f32 %v338, %v431
        %v433 = vpop.f32.mrb[0].mxu0
        %434 = vdwg.mxu0
        %v435 = vld [vmem:[%s296] sm:$0x1]
        %v437 = vlaneseq
        %v438 = vshrl.u32 %v437, 7
        %v439 = vsub.s32 0, %v438
        %v440 = vrot.slane %v435, %v439
        %v442 = vadd.f32 %v429, %v440
        %v443 = vadd.f32 %v432, %v440
        %v444 = vlaneseq
        %v445 = vand.u32 %v444, 127
        %vm446 = vcmp.lt.s32.totalorder %v445, 8
        %v447 = vsel %vm446, %v442, -1e+30
        %v448 = vsel %vm446, %v443, -1e+30
        %449 = vmax.xlane.f32.xlu0 %v447
        %v450 = vpop.xlane.xlu0 %449
        %451 = vmax.xlane.f32.xlu0 %v448
        %v452 = vpop.xlane.xlu0 %451
        %v453 = vsub.f32 %v447, %v450
        %v454 = vsub.f32 %v448, %v452
        %v455 = vmul.f32 %v453, 1.442695
        %v456 = vpow.pop %v455
        %v457 = vmul.f32 %v454, 1.442695
        %v458 = vpow.pop %v457
        %459 = vadd.xlane.f32.xlu0 %v456
        %v460 = vpop.xlane.xlu0 %459
        %461 = vadd.xlane.f32.xlu0 %v458
        %v462 = vpop.xlane.xlu0 %461
        %v463 = vrcp.pop %v460
        %v464 = vrcp.pop %v462
        %v465 = vmul.f32 %v456, %v463
        %v466 = vmul.f32 %v458, %v464
        %v467 = vpack.c.bf16 %v466, %v465
        %468 = vmatprep.subr.bf16.mxu0 0
        %469 = vmatpush1.bf16.msra.mxu0 %v378
        %470 = vmatprep.subr.bf16.mxu0 0
        %471 = vmatpush1.bf16.msra.mxu0 %v379
        %472 = vmatprep.subr.bf16.mxu0 0
        %473 = vmatpush1.bf16.msra.mxu0 %v380
        %474 = vmatprep.subr.bf16.mxu0 0
        %475 = vmatpush1.bf16.msra.mxu0 %v381
        %476 = vmatprep.subr.bf16.mxu0 0
        %477 = vmatpush1.bf16.msra.mxu0 %v382
        %478 = vmatprep.subr.bf16.mxu0 0
        %479 = vmatpush1.bf16.msra.mxu0 %v383
        %480 = vmatprep.subr.bf16.mxu0 0
        %481 = vmatpush1.bf16.msra.mxu0 %v384
        %482 = vmatprep.subr.bf16.mxu0 0
        %483 = vmatpush1.bf16.msra.mxu0 %v385
        %484 = vmatprep.subr.bf16.mxu0 0
        %485 = vmatpush1.bf16.msra.mxu0 0
        %486 = vmatprep.subr.bf16.mxu0 0
        %487 = vmatpush1.bf16.msra.mxu0 0
        %488 = vmatprep.subr.bf16.mxu0 0
        %489 = vmatpush1.bf16.msra.mxu0 0
        %490 = vmatprep.subr.bf16.mxu0 0
        %491 = vmatpush1.bf16.msra.mxu0 0
        %492 = vmatprep.subr.bf16.mxu0 0
        %493 = vmatpush1.bf16.msra.mxu0 0
        %494 = vmatprep.subr.bf16.mxu0 0
        %495 = vmatpush1.bf16.msra.mxu0 0
        %496 = vmatprep.subr.bf16.mxu0 0
        %497 = vmatpush1.bf16.msra.mxu0 0
        %498 = vmatprep.subr.bf16.mxu0 0
        %499 = vmatpush1.bf16.msra.mxu0 0
        %500 = vmatprep.mubr.bf16.mxu0 0
        %501 = vmatmul.mubr.bf16.gmra.mrb[0].mxu0 %v467
        %v502 = vpop.f32.mrb[0].mxu0
        %v503 = vadd.f32 0.0, %v502
        %v504 = vpop.f32.mrb[0].mxu0
        %v505 = vpop.f32.mrb[0].mxu0
        %v506 = vadd.f32 0.0, %v505
        %v507 = vpop.f32.mrb[0].mxu0
        %508 = vdwg.mxu0
        %509 = vst [vmem:[%s267] sm:$0xff] %v309
        %510 = vst [vmem:[%s267 + $0x18] sm:$0xff] %v310
        %511 = vst [vmem:[%s267 + $0x8] sm:$0xff] %v503
        %512 = vst [vmem:[%s267 + $0x20] sm:$0xff] %v506
        %v513 = vmul.f32 %v309, %v503
        %v514 = vmul.f32 %v310, %v506
        %515 = vst [vmem:[%s267 + $0x10] sm:$0xff] %v513
        %516 = vst [vmem:[%s267 + $0x28] sm:$0xff] %v514
        %vm517 = vcmask 7168
        %518 = vst.msk [vmem:[%s306] sm:$0xff] %vm517, %v450
        %519 = vst.msk [vmem:[%s306 + $0x8] sm:$0xff] %vm517, %v452
        %s520 = sand.u32 %s140, 1
        %s521 = sand.u32 %s140, 1
        %s522 = smul.addr %s521, 48
        %s523 = scalar_lea.vmem [#allocation2], %s522
        %s524 = smul.u32 2, %s22
        %p525 = scmp.lt.s32.totalorder %s21, 1
        %s526 = scalar_select %p525, %s21, 1
        %p527 = scmp.lt.s32.totalorder %s524, 1
        %s528 = scalar_select %p527, %s524, 1
        %s529 = smul.addr %s526, 2
        %s530 = sadd.s32 %s528, %s529
        %s531 = smul.addr %s530, 8
        %s532 = scalar_lea.vmem %s5, %s531
        // Predicated region
        $region37: #{attention_no_mask.2} parent=35 // pred_check
          %p533 = pneg %p150
        $region38: #{attention_no_mask.2} parent=35 // pred_check_branch
          %535 = sbr.rel (%p533) target = $region40
        $region39: #{attention_no_mask.2} parent=35 // pred_region
          %s536 = smul.u32 2, %s22
          %s537 = smul.addr %s536, 4
          %s538 = smul.addr %s21, 8
          %s539 = sadd.s32 %s537, %s538
          %s540 = smul.addr %s539, 8
          %s541 = scalar_lea.vmem %s4, %s540
          // Predicated region
          $region41: #{attention_no_mask.2} parent=39 // pred_check
            _
          $region42: #{attention_no_mask.2} parent=39 // pred_check_branch
            %543 = sbr.rel (0) target = $region44
          $region43: #{attention_no_mask.2} parent=39 // pred_region
            // Predicated region
            $region45: #{attention_no_mask.2} parent=43 // pred_check
              _
            $region46: #{attention_no_mask.2} parent=43 // pred_check_branch
              %545 = sbr.rel (0) target = $region48
            $region47: #{attention_no_mask.2} parent=43 // pred_region
              loop: start=0, step=1, limit=1
              $region49: #{attention_no_mask.2} parent=47 // loop_pre_header
                _
              $region50: #{attention_no_mask.2} parent=47 // loop_header
                %s547 = sphi 0, %s551
                %p548 = scmp.ge.s32.totalorder %s547, 1
                %s552 = sphi %s523, %s523
                %s553 = sphi %s541, %s541
              $region51: #{attention_no_mask.2} parent=47 // loop_header_branch
                %550 = sbr.rel (%p548) target = $region55
              $region52: #{attention_no_mask.2} parent=47 // loop_body
                %v554 = vld [vmem:[%s552] sm:$0xff]
                %555 = vst [vmem:[%s553] sm:$0xff] %v554
                %v556 = vld [vmem:[%s552 + $0x8] sm:$0xff]
                %557 = vst [vmem:[%s553 + $0x8] sm:$0xff] %v556
                %v558 = vld [vmem:[%s552 + $0x10] sm:$0xff]
                %559 = vst [vmem:[%s553 + $0x10] sm:$0xff] %v558
                %v560 = vld [vmem:[%s552 + $0x18] sm:$0xff]
                %561 = vst [vmem:[%s553 + $0x20] sm:$0xff] %v560
                %v562 = vld [vmem:[%s552 + $0x20] sm:$0xff]
                %563 = vst [vmem:[%s553 + $0x28] sm:$0xff] %v562
                %v564 = vld [vmem:[%s552 + $0x28] sm:$0xff]
                %565 = vst [vmem:[%s553 + $0x30] sm:$0xff] %v564
              $region53: #{attention_no_mask.2} parent=47 // loop_footer
                %s551 = sadd.s32 1, %s547
              $region54: #{attention_no_mask.2} parent=47 // loop_footer_branch
                %546 = sbr.rel target = $region50
              $region55: #{attention_no_mask.2} parent=47 // loop_exit
                _
            $region48: #{attention_no_mask.2} parent=43 // pred_fallthru
              _
            // Predicated region
            $region56: #{attention_no_mask.2} parent=43 // pred_check
              _
            $region57: #{attention_no_mask.2} parent=43 // pred_check_branch
              %567 = sbr.rel target = $region59
            $region58: #{attention_no_mask.2} parent=43 // pred_region
              _
            $region59: #{attention_no_mask.2} parent=43 // pred_fallthru
              _
          $region44: #{attention_no_mask.2} parent=39 // pred_fallthru
            _
          %568 = vnop
        $region40: #{attention_no_mask.2} parent=35 // pred_fallthru
          _
        // Predicated region
        $region60: #{attention_no_mask.2} parent=35 // pred_check
          %p569 = pneg %p178
        $region61: #{attention_no_mask.2} parent=35 // pred_check_branch
          %571 = sbr.rel (%p569) target = $region63
        $region62: #{attention_no_mask.2} parent=35 // pred_region
          %s572 = smul.u32 2, %s22
        $region63: #{attention_no_mask.2} parent=35 // pred_fallthru
          _
      $region36: #{attention_no_mask.2} parent=5 // pred_fallthru
        _
      %p573 = scmp.le.s32.totalorder 2, %s12
      // Predicated region
      $region64: #{attention_no_mask.2} parent=5 // pred_check
        %p574 = pneg %p573
      $region65: #{attention_no_mask.2} parent=5 // pred_check_branch
        %576 = sbr.rel (%p574) target = $region67
      $region66: #{attention_no_mask.2} parent=5 // pred_region
        %s577 = ssub.s32 %s12, 2
        // Predicated region
        $region68: #{attention_no_mask.2} parent=66 // pred_check
          %p578 = pneg %p156
        $region69: #{attention_no_mask.2} parent=66 // pred_check_branch
          %580 = sbr.rel (%p578) target = $region71
        $region70: #{attention_no_mask.2} parent=66 // pred_region
          %s581 = sand.u32 %s141, 1
          %s582 = sand.u32 %s141, 1
          %s583 = smul.addr %s582, 48
          %s584 = scalar_lea.vmem [#allocation2], %s583
        $region71: #{attention_no_mask.2} parent=66 // pred_fallthru
          _
        // Predicated region
        $region72: #{attention_no_mask.2} parent=66 // pred_check
          %p585 = pneg %p184
        $region73: #{attention_no_mask.2} parent=66 // pred_check_branch
          %587 = sbr.rel (%p585) target = $region75
        $region74: #{attention_no_mask.2} parent=66 // pred_region
          %s588 = smul.u32 2, %s24
          %p589 = scmp.lt.s32.totalorder %s23, 1
          %s590 = scalar_select %p589, %s23, 1
          %p591 = scmp.lt.s32.totalorder %s588, 1
          %s592 = scalar_select %p591, %s588, 1
          %s593 = smul.addr %s590, 2
          %s594 = sadd.s32 %s592, %s593
          %s595 = smul.addr %s594, 8
          %s596 = scalar_lea.vmem %s5, %s595
        $region75: #{attention_no_mask.2} parent=66 // pred_fallthru
          _
      $region67: #{attention_no_mask.2} parent=5 // pred_fallthru
        _
    $region6: #{attention_no_mask.2} parent=1 // loop_footer
      %s16 = sadd.s32 1, %s12
    $region7: #{attention_no_mask.2} parent=1 // loop_footer_branch
      %11 = sbr.rel target = $region3
    $region8: #{attention_no_mask.2} parent=1 // loop_exit
      _

</llo_original>
